<compile_context>
chip_gen: v7x
topology: tpu7x:2x2x1
jax: 0.10.0
libtpu: 0.0.40
codegen_flags: <defaults>
</compile_context>

<pallas_src>
import functools

import jax
import jax.numpy as jnp
import numpy as np
from jax.experimental import pallas as pl
from jax.experimental.pallas import tpu as pltpu

EPS = 1e-3
_MIB = 1024 * 1024
_LANES = 128


# ---------------------------------------------------------------------------
# Generation-aware VMEM budget
# ---------------------------------------------------------------------------
def _vmem_budgets():
    """Returns (block_budget_bytes, vmem_limit_bytes) for this TPU generation."""
    phys = 128 * _MIB
    try:
        info = pltpu.get_tpu_info()
        phys = int(getattr(info, "vmem_capacity_bytes", phys))
    except Exception:
        pass
    # v5e / v6e (128 MiB physical) -> 64 MiB scoped limit, ~52 MiB of blocks.
    # v7x (64 MiB physical per TC) -> 48 MiB scoped limit, ~36 MiB of blocks.
    limit = min(64 * _MIB, (phys * 3) // 4)
    block_budget = max(8 * _MIB, limit - 12 * _MIB)
    return block_budget, limit


# ---------------------------------------------------------------------------
# Kernel 1: FLAT path — dense (rows, 128) blocks, whole batch element(s)/block
# ---------------------------------------------------------------------------
def _flat_concat_bn_relu_kernel(x1_ref, x2_ref, scale_ref, shift_ref, o_ref):
    # x1_ref: (Nb, R1, 128)   x2_ref: (Nb, R2, 128)   (input dtype)
    # scale_ref / shift_ref: (R1+R2, 128) f32 — pre-broadcast BN, VMEM-resident
    # o_ref: (Nb, R1+R2, 128) (output dtype == input dtype)
    r1 = x1_ref.shape[1]
    y1 = jnp.maximum(
        x1_ref[...].astype(jnp.float32) * scale_ref[:r1, :] + shift_ref[:r1, :],
        0.0)
    y2 = jnp.maximum(
        x2_ref[...].astype(jnp.float32) * scale_ref[r1:, :] + shift_ref[r1:, :],
        0.0)
    o_ref[:, :r1, :] = y1.astype(o_ref.dtype)
    o_ref[:, r1:, :] = y2.astype(o_ref.dtype)


# ---------------------------------------------------------------------------
# Kernel 2: CHANNEL path — full C on sublanes, lane tile over H*W
# ---------------------------------------------------------------------------
def _channel_concat_bn_relu_kernel(x1_ref, x2_ref, scale_ref, shift_ref, o_ref):
    # x1_ref: (C1, T)  x2_ref: (C2, T)  scale/shift: (C1+C2, 1) f32  o_ref: (C1+C2, T)
    c1 = x1_ref.shape[0]
    o_ref[:c1, :] = jnp.maximum(
        x1_ref[...].astype(jnp.float32) * scale_ref[:c1, :] + shift_ref[:c1, :],
        0.0).astype(o_ref.dtype)
    o_ref[c1:, :] = jnp.maximum(
        x2_ref[...].astype(jnp.float32) * scale_ref[c1:, :] + shift_ref[c1:, :],
        0.0).astype(o_ref.dtype)


# ---------------------------------------------------------------------------
# DPNFinalBlock forward
# ---------------------------------------------------------------------------
def dpn_final_block_forward(bn_params, x1_nchw, x2_nchw):
    assert x2_nchw is not None
    gamma, beta, mean, var = bn_params            # each (C1 + C2,) f32

    N, C1, H, W = x1_nchw.shape
    N2, C2, H2, W2 = x2_nchw.shape
    assert (N2, H2, W2) == (N, H, W)
    assert x1_nchw.dtype == x2_nchw.dtype
    C = C1 + C2
    HW = H * W
    L1, L2 = C1 * HW, C2 * HW
    L = L1 + L2

    out_dtype = x1_nchw.dtype                     # preserve caller dtype (bf16 path)
    in_isz = x1_nchw.dtype.itemsize
    out_isz = jnp.dtype(out_dtype).itemsize

    # Fold eval-mode BN into per-channel scale/shift (f32 compute).
    scale = (gamma.astype(jnp.float32)
             / jnp.sqrt(var.astype(jnp.float32) + EPS))
    shift = beta.astype(jnp.float32) - mean.astype(jnp.float32) * scale

    block_budget, vmem_limit = _vmem_budgets()

    # ------------------------------------------------------------------ FLAT
    flat_ok = (L1 % _LANES == 0) and (L2 % _LANES == 0)
    nb_max = 0
    if flat_ok:
        per_batch = (L1 + L2) * in_isz + L * out_isz          # one batch's blocks
        resident = 2 * L * 4 * 2                               # scale+shift (x2 buf)
        nb_max = (block_budget - resident) // (2 * per_batch)  # 2 = double buffer
        flat_ok = nb_max >= 1

    if flat_ok:
        R1, R2 = L1 // _LANES, L2 // _LANES
        R = R1 + R2
        # Keep >= 2 grid steps when N >= 2 so both v7x TensorCores get work.
        nb = max(1, min(int(nb_max), (N + 1) // 2))
        # TODO(synk): for N == 1 the grid is a single step (one TC idle on v7x);
        #             a row-split would need seam-aligned tiling — not done here.

        x1f = x1_nchw.reshape(N, R1, _LANES)                   # free reshapes
        x2f = x2_nchw.reshape(N, R2, _LANES)
        scale_f = jnp.repeat(scale, HW).reshape(R, _LANES)     # flat-layout broadcast
        shift_f = jnp.repeat(shift, HW).reshape(R, _LANES)

        out = pl.pallas_call(
            _flat_concat_bn_relu_kernel,
            out_shape=jax.ShapeDtypeStruct((N, R, _LANES), out_dtype),
            grid=(pl.cdiv(N, nb),),
            in_specs=[
                pl.BlockSpec((nb, R1, _LANES), lambda i: (i, 0, 0)),
                pl.BlockSpec((nb, R2, _LANES), lambda i: (i, 0, 0)),
                pl.BlockSpec((R, _LANES), lambda i: (0, 0)),   # resident
                pl.BlockSpec((R, _LANES), lambda i: (0, 0)),   # resident
            ],
            out_specs=pl.BlockSpec((nb, R, _LANES), lambda i: (i, 0, 0)),
            compiler_params=pltpu.CompilerParams(
                dimension_semantics=("parallel",),
                vmem_limit_bytes=vmem_limit),
        )(x1f, x2f, scale_f, shift_f)
        return out.reshape(N, C, H, W), None

    # --------------------------------------------------------------- CHANNEL
    # Fallback / large-spatial path: channels on sublanes (full C per block),
    # lane tile T over the flattened spatial axis.
    x1c = x1_nchw.reshape(N, C1, HW)
    x2c = x2_nchw.reshape(N, C2, HW)

    bytes_per_lane = C * (in_isz + out_isz)
    t_max = max(1, block_budget // (2 * bytes_per_lane))       # 2 = double buffer
    if HW <= max(int(t_max), _LANES):
        T = HW                                                 # single full-width tile
    else:
        T = max(_LANES, (min(int(t_max), HW) // _LANES) * _LANES)
    n_t = pl.cdiv(HW, T)
    # Make sure v7x's second TensorCore has work when the grid would collapse.
    if N * n_t < 2 and HW >= 2 * _LANES:
        T = (((HW + 1) // 2) + _LANES - 1) // _LANES * _LANES
        n_t = pl.cdiv(HW, T)

    out = pl.pallas_call(
        _channel_concat_bn_relu_kernel,
        out_shape=jax.ShapeDtypeStruct((N, C, HW), out_dtype),
        grid=(N, n_t),
        in_specs=[
            pl.BlockSpec((None, C1, T), lambda n, j: (n, 0, j)),
            pl.BlockSpec((None, C2, T), lambda n, j: (n, 0, j)),
            pl.BlockSpec((C, 1), lambda n, j: (0, 0)),         # resident
            pl.BlockSpec((C, 1), lambda n, j: (0, 0)),         # resident
        ],
        out_specs=pl.BlockSpec((None, C, T), lambda n, j: (n, 0, j)),
        compiler_params=pltpu.CompilerParams(
            dimension_semantics=("parallel", "parallel"),
            vmem_limit_bytes=vmem_limit),
    )(x1c, x2c, scale.reshape(C, 1), shift.reshape(C, 1))

    return out.reshape(N, C, H, W), None


# ---------------------------------------------------------------------------
# Pure-JAX reference (for verification)
# ---------------------------------------------------------------------------
def dpn_final_block_reference(bn_params, x1_nchw, x2_nchw):
    gamma, beta, mean, var = bn_params
    x = jnp.concatenate((x1_nchw.astype(jnp.float32),
                         x2_nchw.astype(jnp.float32)), axis=1)
    g = gamma.reshape(1, -1, 1, 1)
    b = beta.reshape(1, -1, 1, 1)
    m = mean.reshape(1, -1, 1, 1)
    v = var.reshape(1, -1, 1, 1)
    y = (x - m) / jnp.sqrt(v + EPS) * g + b
    return jnp.maximum(y, 0.0), None


# ---------------------------------------------------------------------------
# Deterministic parameter init
# ---------------------------------------------------------------------------
def _make_bn(key, c):
    k1, k2, k3, k4 = jax.random.split(key, 4)
    gamma = 1.0 + 0.1 * jax.random.normal(k1, (c,), jnp.float32)
    beta = 0.1 * jax.random.normal(k2, (c,), jnp.float32)
    mean = 0.1 * jax.random.normal(k3, (c,), jnp.float32)
    var = jax.random.uniform(k4, (c,), jnp.float32, 0.5, 1.5)
    return (gamma, beta, mean, var)


# ---------------------------------------------------------------------------
if __name__ == "__main__":
    key = jax.random.PRNGKey(0)

    configs = [
        # (N, C1, C2, H, W, dtype, tol)
        (2, 192, 64, 8, 8, jnp.float32, 1e-5),    # FLAT dense path, f32
        (2, 192, 64, 8, 8, jnp.bfloat16, 2e-2),   # FLAT dense path, bf16 I/O
        (2, 16, 8, 7, 7, jnp.float32, 1e-5),      # 7x7, flat-misaligned -> CHANNEL path
    ]

    for (N, C1, C2, H, W, dt, tol) in configs:
        key, kp, k1, k2 = jax.random.split(key, 4)
        bn_params = _make_bn(kp, C1 + C2)
        x1 = jax.random.normal(k1, (N, C1, H, W), jnp.float32).astype(dt)
        x2 = jax.random.normal(k2, (N, C2, H, W), jnp.float32).astype(dt)

        fwd = jax.jit(functools.partial(dpn_final_block_forward, bn_params))
        out, none_out = fwd(x1, x2)
        jax.block_until_ready(out)

        ref, _ = dpn_final_block_reference(bn_params, x1, x2)
        np.testing.assert_allclose(
            np.asarray(out, dtype=np.float32),
            np.asarray(ref, dtype=np.float32),
            rtol=tol, atol=tol)

        assert none_out is None
        assert out.shape == (N, C1 + C2, H, W)
        assert out.dtype == jnp.dtype(dt)

    print("KERNEL_OK")
</pallas_src>

<mosaic_0001>
module attributes {stable_mosaic.version = 11 : i64} {
  func.func @_flat_concat_bn_relu_kernel(%arg0: i32, %arg1: memref<1x96x128xf32, #tpu.memory_space<vmem>>, %arg2: memref<1x32x128xf32, #tpu.memory_space<vmem>>, %arg3: memref<128x128xf32, #tpu.memory_space<vmem>>, %arg4: memref<128x128xf32, #tpu.memory_space<vmem>>, %arg5: memref<1x128x128xf32, #tpu.memory_space<vmem>>) attributes {dimension_semantics = [#tpu.dimension_semantics<parallel>], iteration_bounds = array<i64: 2>, scalar_prefetch = 0 : i64, scratch_operands = 0 : i64, tpu.core_type = #tpu.core_type<tc>, window_params = [{transform_indices = @transform_0, window_bounds = array<i64: 1, 96, 128>}, {transform_indices = @transform_1, window_bounds = array<i64: 1, 32, 128>}, {pipeline_mode = #tpu.pipeline_mode<synchronous>, transform_indices = @transform_2, window_bounds = array<i64: 128, 128>}, {pipeline_mode = #tpu.pipeline_mode<synchronous>, transform_indices = @transform_3, window_bounds = array<i64: 128, 128>}, {transform_indices = @transform_4, window_bounds = array<i64: 1, 128, 128>}]} {
    %c0 = arith.constant 0 : index
    %c0_0 = arith.constant 0 : index
    %c0_1 = arith.constant 0 : index
    %0 = vector.load %arg1[%c0, %c0_0, %c0_1] : memref<1x96x128xf32, #tpu.memory_space<vmem>>, vector<1x96x128xf32>
    %c0_2 = arith.constant 0 : index
    %c0_3 = arith.constant 0 : index
    %1 = vector.load %arg3[%c0_2, %c0_3] : memref<128x128xf32, #tpu.memory_space<vmem>>, vector<96x128xf32>
    %2 = vector.shape_cast %1 : vector<96x128xf32> to vector<1x96x128xf32>
    %3 = arith.mulf %0, %2 : vector<1x96x128xf32>
    %c0_4 = arith.constant 0 : index
    %c0_5 = arith.constant 0 : index
    %4 = vector.load %arg4[%c0_4, %c0_5] : memref<128x128xf32, #tpu.memory_space<vmem>>, vector<96x128xf32>
    %5 = vector.shape_cast %4 : vector<96x128xf32> to vector<1x96x128xf32>
    %6 = arith.addf %3, %5 : vector<1x96x128xf32>
    %cst = arith.constant 0.000000e+00 : f32
    %7 = vector.broadcast %cst : f32 to vector<1x96x128xf32>
    %8 = arith.maximumf %6, %7 : vector<1x96x128xf32>
    %c0_6 = arith.constant 0 : index
    %c0_7 = arith.constant 0 : index
    %c0_8 = arith.constant 0 : index
    %9 = vector.load %arg2[%c0_6, %c0_7, %c0_8] : memref<1x32x128xf32, #tpu.memory_space<vmem>>, vector<1x32x128xf32>
    %c96 = arith.constant 96 : index
    %c0_9 = arith.constant 0 : index
    %10 = vector.load %arg3[%c96, %c0_9] : memref<128x128xf32, #tpu.memory_space<vmem>>, vector<32x128xf32>
    %11 = vector.shape_cast %10 : vector<32x128xf32> to vector<1x32x128xf32>
    %12 = arith.mulf %9, %11 : vector<1x32x128xf32>
    %c96_10 = arith.constant 96 : index
    %c0_11 = arith.constant 0 : index
    %13 = vector.load %arg4[%c96_10, %c0_11] : memref<128x128xf32, #tpu.memory_space<vmem>>, vector<32x128xf32>
    %14 = vector.shape_cast %13 : vector<32x128xf32> to vector<1x32x128xf32>
    %15 = arith.addf %12, %14 : vector<1x32x128xf32>
    %cst_12 = arith.constant 0.000000e+00 : f32
    %16 = vector.broadcast %cst_12 : f32 to vector<1x32x128xf32>
    %17 = arith.maximumf %15, %16 : vector<1x32x128xf32>
    %c0_13 = arith.constant 0 : index
    %c0_14 = arith.constant 0 : index
    %c0_15 = arith.constant 0 : index
    %18 = vector.load %arg5[%c0_13, %c0_14, %c0_15] : memref<1x128x128xf32, #tpu.memory_space<vmem>>, vector<1x96x128xf32>
    tpu.vector_store %arg5[%c0_13, %c0_14, %c0_15], %8 {strides = array<i32>} : memref<1x128x128xf32, #tpu.memory_space<vmem>>, vector<1x96x128xf32>,
    %c0_16 = arith.constant 0 : index
    %c96_17 = arith.constant 96 : index
    %c0_18 = arith.constant 0 : index
    %19 = vector.load %arg5[%c0_16, %c96_17, %c0_18] : memref<1x128x128xf32, #tpu.memory_space<vmem>>, vector<1x32x128xf32>
    tpu.vector_store %arg5[%c0_16, %c96_17, %c0_18], %17 {strides = array<i32>} : memref<1x128x128xf32, #tpu.memory_space<vmem>>, vector<1x32x128xf32>,
    return
  }
  func.func @transform_0(%arg0: i32) -> (i32, i32, i32) {
    %c0_i32 = arith.constant 0 : i32
    %c0_i32_0 = arith.constant 0 : i32
    %c0_i32_1 = arith.constant 0 : i32
    return %arg0, %c0_i32, %c0_i32_0 : i32, i32, i32
  }
  func.func @transform_1(%arg0: i32) -> (i32, i32, i32) {
    %c0_i32 = arith.constant 0 : i32
    %c0_i32_0 = arith.constant 0 : i32
    %c0_i32_1 = arith.constant 0 : i32
    return %arg0, %c0_i32, %c0_i32_0 : i32, i32, i32
  }
  func.func @transform_2(%arg0: i32) -> (i32, i32) {
    %c0_i32 = arith.constant 0 : i32
    %c0_i32_0 = arith.constant 0 : i32
    %c0_i32_1 = arith.constant 0 : i32
    return %c0_i32, %c0_i32_0 : i32, i32
  }
  func.func @transform_3(%arg0: i32) -> (i32, i32) {
    %c0_i32 = arith.constant 0 : i32
    %c0_i32_0 = arith.constant 0 : i32
    %c0_i32_1 = arith.constant 0 : i32
    return %c0_i32, %c0_i32_0 : i32, i32
  }
  func.func @transform_4(%arg0: i32) -> (i32, i32, i32) {
    %c0_i32 = arith.constant 0 : i32
    %c0_i32_0 = arith.constant 0 : i32
    %c0_i32_1 = arith.constant 0 : i32
    return %arg0, %c0_i32, %c0_i32_0 : i32, i32, i32
  }
}

</mosaic_0001>

<llo_original>
// kernel: dpn_final_block_forward.1
$region0: #{dpn_final_block_forward.1}
  #allocation0 [shape = 'u32[]', space=smem, size = 0x4, offset = 0x4, fixed_abs, tag = 'smem constant byte address 0x4 - core index']
  #allocation1 [shape = 'u32[144,128]{1,0:T(1,128)}', space=vmem, size = 0x12000, scoped, tag = 'internal scratch']
  %s0 = inlined_call_operand.hbm [shape: f32[2,96,128], index: 0, kind: input, shape index: {}]
  %s1 = inlined_call_operand.hbm [shape: f32[2,32,128], index: 1, kind: input, shape index: {}]
  %s2 = inlined_call_operand.hbm [shape: f32[128,128], index: 2, kind: input, shape index: {}]
  %s3 = inlined_call_operand.hbm [shape: f32[128,128], index: 3, kind: input, shape index: {}]
  %s4 = inlined_call_operand.hbm [shape: f32[2,128,128], index: 4, kind: output, shape index: {}]
  %s5 = sld [smem:[#allocation0]]
  $region65: #{dpn_final_block_forward.1} parent=0
    _
  %s7 = ssub.s32 1, %s5
  %s8 = scalar_select 0, %s7, %s5
  $region1: #{dpn_final_block_forward.1} parent=0
    #allocation2 [shape = 'u8[98304]{0}', space=vmem, size = 0x18000, scoped, tag = 'input window, operand 0']
    #allocation3 [shape = 's32[2]{0}', space=sflag, size = 0x8, scoped, tag = 'scoped memory for dpn_final_block_forward.1']
    #allocation4 [shape = 's32[2]{0}', space=sflag, size = 0x8, scoped, tag = 'scoped memory for dpn_final_block_forward.1']
    #allocation5 [shape = 'u8[32768]{0}', space=vmem, size = 0x8000, scoped, tag = 'input window, operand 1']
    #allocation6 [shape = 's32[2]{0}', space=sflag, size = 0x8, scoped, tag = 'scoped memory for dpn_final_block_forward.1']
    #allocation7 [shape = 'u8[65536]{0}', space=vmem, size = 0x10000, scoped, tag = 'input window, operand 2, single buffered']
    #allocation8 [shape = 'u8[65536]{0}', space=vmem, size = 0x10000, scoped, tag = 'input window, operand 3, single buffered']
    #allocation9 [shape = 's32[1]{0}', space=sflag, size = 0x4, scoped, tag = 'scoped memory for dpn_final_block_forward.1']
    #allocation10 [shape = 'u8[131072]{0}', space=vmem, size = 0x20000, scoped, tag = 'output window, operand 0']
    %9 = vsyncpa [#allocation3], 0
    %s10 = scalar_lea.sflag [#allocation3], 1
    %11 = vsyncpa %s10, 0
    %12 = vsyncpa [#allocation6], 0
    %s13 = scalar_lea.sflag [#allocation6], 1
    %14 = vsyncpa %s13, 0
    %15 = vsyncpa [#allocation9], 0
    %16 = vsyncpa [#allocation4], 0
    %s17 = scalar_lea.sflag [#allocation4], 1
    %18 = vsyncpa %s17, 0
    loop: start=0, step=1, limit=4
    $region2: #{dpn_final_block_forward.1} parent=1 // loop_pre_header
      _
    $region3: #{dpn_final_block_forward.1} parent=1 // loop_header
      %s20 = sphi 0, %s24
      %p21 = scmp.ge.s32.totalorder %s20, 4
      %s30 = sphi 0, %s32
      %s33 = sphi 0, %s30
      %s34 = sphi 0, %s33
      %s50 = sphi 0, %s34
      %s56 = sphi 0, %s58
      %s59 = sphi 0, %s56
      %s60 = sphi 0, %s59
      %s76 = sphi 0, %s60
      %s80 = sphi 0, %s80
      %s82 = sphi 0, %s80
      %s83 = sphi 0, %s82
      %s97 = sphi 0, %s83
      %s101 = sphi 0, %s101
      %s103 = sphi 0, %s101
      %s104 = sphi 0, %s103
      %s118 = sphi 0, %s104
      %s124 = sphi 0, %s126
      %s127 = sphi 0, %s124
      %s128 = sphi 0, %s127
      %s144 = sphi 0, %s128
    $region4: #{dpn_final_block_forward.1} parent=1 // loop_header_branch
      %23 = sbr.rel (%p21) target = $region8
    $region5: #{dpn_final_block_forward.1} parent=1 // loop_body
      %s25 = ssub.s32 %s20, 1
      %s26 = ssub.s32 %s20, 2
      %s27 = sadd.s32 %s20, 1
      %s28 = ssub.s32 %s20, %s27
      %p29 = scmp.eq.s32.totalorder %s28, 0
      %s31 = sadd.s32 %s30, 1
      %s32 = scalar_select %p29, %s30, %s31
      %p35 = pneg %p29
      %p36 = scmp.eq.s32.totalorder %s20, 1
      %p37 = por %p35, %p36
      %p38 = scmp.ne.s32.totalorder %s30, %s33
      %p39 = scmp.eq.s32.totalorder %s20, 0
      %p40 = por %p38, %p39
      %p41 = scmp.ne.s32.totalorder %s30, %s33
      %p42 = scmp.eq.s32.totalorder %s25, 1
      %p43 = por %p41, %p42
      %p44 = scmp.ne.s32.totalorder %s33, %s34
      %p45 = scmp.eq.s32.totalorder %s25, 0
      %p46 = por %p44, %p45
      %p47 = scmp.ne.s32.totalorder %s33, %s34
      %p48 = scmp.eq.s32.totalorder %s26, 1
      %p49 = por %p47, %p48
      %p51 = scmp.ne.s32.totalorder %s34, %s50
      %p52 = scmp.eq.s32.totalorder %s26, 0
      %p53 = por %p51, %p52
      %s54 = ssub.s32 %s20, %s27
      %p55 = scmp.eq.s32.totalorder %s54, 0
      %s57 = sadd.s32 %s56, 1
      %s58 = scalar_select %p55, %s56, %s57
      %p61 = pneg %p55
      %p62 = scmp.eq.s32.totalorder %s20, 1
      %p63 = por %p61, %p62
      %p64 = scmp.ne.s32.totalorder %s56, %s59
      %p65 = scmp.eq.s32.totalorder %s20, 0
      %p66 = por %p64, %p65
      %p67 = scmp.ne.s32.totalorder %s56, %s59
      %p68 = scmp.eq.s32.totalorder %s25, 1
      %p69 = por %p67, %p68
      %p70 = scmp.ne.s32.totalorder %s59, %s60
      %p71 = scmp.eq.s32.totalorder %s25, 0
      %p72 = por %p70, %p71
      %p73 = scmp.ne.s32.totalorder %s59, %s60
      %p74 = scmp.eq.s32.totalorder %s26, 1
      %p75 = por %p73, %p74
      %p77 = scmp.ne.s32.totalorder %s60, %s76
      %p78 = scmp.eq.s32.totalorder %s26, 0
      %p79 = por %p77, %p78
      %s81 = sadd.s32 %s80, 1
      %p84 = scmp.eq.s32.totalorder %s20, 1
      %p85 = scmp.ne.s32.totalorder %s80, %s82
      %p86 = scmp.eq.s32.totalorder %s20, 0
      %p87 = por %p85, %p86
      %p88 = scmp.ne.s32.totalorder %s80, %s82
      %p89 = scmp.eq.s32.totalorder %s25, 1
      %p90 = por %p88, %p89
      %p91 = scmp.ne.s32.totalorder %s82, %s83
      %p92 = scmp.eq.s32.totalorder %s25, 0
      %p93 = por %p91, %p92
      %p94 = scmp.ne.s32.totalorder %s82, %s83
      %p95 = scmp.eq.s32.totalorder %s26, 1
      %p96 = por %p94, %p95
      %p98 = scmp.ne.s32.totalorder %s83, %s97
      %p99 = scmp.eq.s32.totalorder %s26, 0
      %p100 = por %p98, %p99
      %s102 = sadd.s32 %s101, 1
      %p105 = scmp.eq.s32.totalorder %s20, 1
      %p106 = scmp.ne.s32.totalorder %s101, %s103
      %p107 = scmp.eq.s32.totalorder %s20, 0
      %p108 = por %p106, %p107
      %p109 = scmp.ne.s32.totalorder %s101, %s103
      %p110 = scmp.eq.s32.totalorder %s25, 1
      %p111 = por %p109, %p110
      %p112 = scmp.ne.s32.totalorder %s103, %s104
      %p113 = scmp.eq.s32.totalorder %s25, 0
      %p114 = por %p112, %p113
      %p115 = scmp.ne.s32.totalorder %s103, %s104
      %p116 = scmp.eq.s32.totalorder %s26, 1
      %p117 = por %p115, %p116
      %p119 = scmp.ne.s32.totalorder %s104, %s118
      %p120 = scmp.eq.s32.totalorder %s26, 0
      %p121 = por %p119, %p120
      %s122 = ssub.s32 %s20, %s27
      %p123 = scmp.eq.s32.totalorder %s122, 0
      %s125 = sadd.s32 %s124, 1
      %s126 = scalar_select %p123, %s124, %s125
      %p129 = pneg %p123
      %p130 = scmp.eq.s32.totalorder %s20, 1
      %p131 = por %p129, %p130
      %p132 = scmp.ne.s32.totalorder %s124, %s127
      %p133 = scmp.eq.s32.totalorder %s20, 0
      %p134 = por %p132, %p133
      %p135 = scmp.ne.s32.totalorder %s124, %s127
      %p136 = scmp.eq.s32.totalorder %s25, 1
      %p137 = por %p135, %p136
      %p138 = scmp.ne.s32.totalorder %s127, %s128
      %p139 = scmp.eq.s32.totalorder %s25, 0
      %p140 = por %p138, %p139
      %p141 = scmp.ne.s32.totalorder %s127, %s128
      %p142 = scmp.eq.s32.totalorder %s26, 1
      %p143 = por %p141, %p142
      %p145 = scmp.ne.s32.totalorder %s128, %s144
      %p146 = scmp.eq.s32.totalorder %s26, 0
      %p147 = por %p145, %p146
      %p148 = scmp.le.s32.totalorder 1, %s20
      %p149 = scmp.lt.s32.totalorder %s20, 3
      %p150 = pnand %p148, %p149
      %p151 = pneg %p150
      // Predicated region
      $region9: #{dpn_final_block_forward.1} parent=5 // pred_check
        _
      $region10: #{dpn_final_block_forward.1} parent=5 // pred_check_branch
        %153 = sbr.rel (%p150) target = $region12
      $region11: #{dpn_final_block_forward.1} parent=5 // pred_region
        %s154 = ssub.s32 %s20, 1
        // Predicated region
        $region13: #{dpn_final_block_forward.1} parent=11 // pred_check
          %p155 = pneg %p93
        $region14: #{dpn_final_block_forward.1} parent=11 // pred_check_branch
          %157 = sbr.rel (%p155) target = $region16
        $region15: #{dpn_final_block_forward.1} parent=11 // pred_region
          %s159 = ssub.s32 2048, 2048
          %160 = vsyncadd [#allocation6], %s159
          %s161 = sshll.u32 [#allocation7], 4
          %s162 = int_to_ptr.vmem [resolvable:$true] %s161
          %167 = dma.hbm_to_vmem [thread:$0]  %s2, 2048, %s162, [#allocation6], 128, 128, 8
        $region16: #{dpn_final_block_forward.1} parent=11 // pred_fallthru
          _
        // Predicated region
        $region17: #{dpn_final_block_forward.1} parent=11 // pred_check
          %p168 = pneg %p114
        $region18: #{dpn_final_block_forward.1} parent=11 // pred_check_branch
          %170 = sbr.rel (%p168) target = $region20
        $region19: #{dpn_final_block_forward.1} parent=11 // pred_region
          %s172 = ssub.s32 2048, 2048
          %173 = vsyncadd [#allocation9], %s172
          %s174 = sshll.u32 [#allocation8], 4
          %s175 = int_to_ptr.vmem [resolvable:$true] %s174
          %180 = dma.hbm_to_vmem [thread:$0]  %s3, 2048, %s175, [#allocation9], 128, 128, 8
        $region20: #{dpn_final_block_forward.1} parent=11 // pred_fallthru
          _
      $region12: #{dpn_final_block_forward.1} parent=5 // pred_fallthru
        _
      %p181 = scmp.lt.s32.totalorder %s20, 2
      // Predicated region
      $region21: #{dpn_final_block_forward.1} parent=5 // pred_check
        %p182 = pneg %p181
      $region22: #{dpn_final_block_forward.1} parent=5 // pred_check_branch
        %184 = sbr.rel (%p182) target = $region24
      $region23: #{dpn_final_block_forward.1} parent=5 // pred_region
        // Predicated region
        $region25: #{dpn_final_block_forward.1} parent=23 // pred_check
          %p185 = pneg %p40
        $region26: #{dpn_final_block_forward.1} parent=23 // pred_check_branch
          %187 = sbr.rel (%p185) target = $region28
        $region27: #{dpn_final_block_forward.1} parent=23 // pred_region
          %s188 = sand.u32 %s30, 1
          %s189 = scalar_lea.sflag [#allocation3], %s188
          %s190 = sand.u32 %s30, 1
          %s191 = smul.addr %s190, 96
          %s192 = scalar_lea.vmem [#allocation2], %s191
          %s194 = ssub.s32 1536, 1536
          %195 = vsyncadd %s189, %s194
          %s196 = smul.addr %s20, 12
          %s197 = smul.addr %s196, 128
          %s198 = scalar_lea.hbm %s0, %s197
          %s199 = sshll.u32 %s192, 4
          %s200 = int_to_ptr.vmem [resolvable:$true] %s199
          %205 = dma.hbm_to_vmem [thread:$0]  %s198, 1536, %s200, %s189, 128, 128, 8
        $region28: #{dpn_final_block_forward.1} parent=23 // pred_fallthru
          _
        // Predicated region
        $region29: #{dpn_final_block_forward.1} parent=23 // pred_check
          %p206 = pneg %p66
        $region30: #{dpn_final_block_forward.1} parent=23 // pred_check_branch
          %208 = sbr.rel (%p206) target = $region32
        $region31: #{dpn_final_block_forward.1} parent=23 // pred_region
          %s209 = sand.u32 %s20, 1
          %s210 = scalar_lea.sflag [#allocation6], %s209
          %s211 = sand.u32 %s56, 1
          %s212 = smul.addr %s211, 32
          %s213 = scalar_lea.vmem [#allocation5], %s212
          %s215 = ssub.s32 512, 512
          %216 = vsyncadd %s210, %s215
          %s217 = smul.addr %s20, 4
          %s218 = smul.addr %s217, 128
          %s219 = scalar_lea.hbm %s1, %s218
          %s220 = sshll.u32 %s213, 4
          %s221 = int_to_ptr.vmem [resolvable:$true] %s220
          %226 = dma.hbm_to_vmem [thread:$0]  %s219, 512, %s221, %s210, 128, 128, 8
        $region32: #{dpn_final_block_forward.1} parent=23 // pred_fallthru
          _
      $region24: #{dpn_final_block_forward.1} parent=5 // pred_fallthru
        _
      %p227 = scmp.le.s32.totalorder 1, %s20
      %p228 = scmp.lt.s32.totalorder %s20, 3
      %p229 = pnand %p227, %p228
      %p230 = pneg %p229
      // Predicated region
      $region33: #{dpn_final_block_forward.1} parent=5 // pred_check
        _
      $region34: #{dpn_final_block_forward.1} parent=5 // pred_check_branch
        %232 = sbr.rel (%p229) target = $region36
      $region35: #{dpn_final_block_forward.1} parent=5 // pred_region
        %s233 = ssub.s32 %s20, 1
        %s234 = sand.u32 %s33, 1
        %s235 = scalar_lea.sflag [#allocation3], %s234
        %s236 = sand.u32 %s33, 1
        %s237 = smul.addr %s236, 96
        %s238 = scalar_lea.vmem [#allocation2], %s237
        // Predicated region
        $region37: #{dpn_final_block_forward.1} parent=35 // pred_check
          %p239 = pneg %p46
        $region38: #{dpn_final_block_forward.1} parent=35 // pred_check_branch
          %241 = sbr.rel (%p239) target = $region40
        $region39: #{dpn_final_block_forward.1} parent=35 // pred_region
          %242 = dma.done %s235, 1536
        $region40: #{dpn_final_block_forward.1} parent=35 // pred_fallthru
          _
        %s243 = sand.u32 %s25, 1
        %s244 = scalar_lea.sflag [#allocation6], %s243
        %s245 = sand.u32 %s59, 1
        %s246 = smul.addr %s245, 32
        %s247 = scalar_lea.vmem [#allocation5], %s246
        // Predicated region
        $region41: #{dpn_final_block_forward.1} parent=35 // pred_check
          %p248 = pneg %p72
        $region42: #{dpn_final_block_forward.1} parent=35 // pred_check_branch
          %250 = sbr.rel (%p248) target = $region44
        $region43: #{dpn_final_block_forward.1} parent=35 // pred_region
          %251 = dma.done %s244, 512
        $region44: #{dpn_final_block_forward.1} parent=35 // pred_fallthru
          _
        // Predicated region
        $region45: #{dpn_final_block_forward.1} parent=35 // pred_check
          %p252 = pneg %p93
        $region46: #{dpn_final_block_forward.1} parent=35 // pred_check_branch
          %254 = sbr.rel (%p252) target = $region48
        $region47: #{dpn_final_block_forward.1} parent=35 // pred_region
          %255 = dma.done [#allocation6], 2048
        $region48: #{dpn_final_block_forward.1} parent=35 // pred_fallthru
          _
        // Predicated region
        $region49: #{dpn_final_block_forward.1} parent=35 // pred_check
          %p256 = pneg %p114
        $region50: #{dpn_final_block_forward.1} parent=35 // pred_check_branch
          %258 = sbr.rel (%p256) target = $region52
        $region51: #{dpn_final_block_forward.1} parent=35 // pred_region
          %259 = dma.done [#allocation9], 2048
        $region52: #{dpn_final_block_forward.1} parent=35 // pred_fallthru
          _
        %s260 = sand.u32 %s33, 1
        %s261 = scalar_lea.sflag [#allocation3], %s260
        %s262 = sand.u32 %s33, 1
        %s263 = smul.addr %s262, 96
        %s264 = scalar_lea.vmem [#allocation2], %s263
        %p265 = pneg %p46
        %p266 = pneg %p43
        %s267 = sand.u32 %s25, 1
        %s268 = scalar_lea.sflag [#allocation6], %s267
        %s269 = sand.u32 %s59, 1
        %s270 = smul.addr %s269, 32
        %s271 = scalar_lea.vmem [#allocation5], %s270
        %p272 = pneg %p72
        %p273 = pneg %p69
        %p274 = pneg %p93
        %p275 = pneg %p90
        %p276 = pneg %p114
        %p277 = pneg %p111
        %p278 = pneg %p140
        %p279 = pneg %p137
        %s280 = sand.u32 %s127, 1
        %s281 = scalar_lea.sflag [#allocation4], %s280
        %s282 = sand.u32 %s127, 1
        %s283 = smul.addr %s282, 128
        %s284 = scalar_lea.vmem [#allocation10], %s283
        %v285 = vld [vmem:[%s238] sm:$0xff]
        %v286 = vld [vmem:[%s238 + $0x8] sm:$0xff]
        %v287 = vld [vmem:[%s238 + $0x10] sm:$0xff]
        %v288 = vld [vmem:[%s238 + $0x18] sm:$0xff]
        %v289 = vld [vmem:[%s238 + $0x20] sm:$0xff]
        %v290 = vld [vmem:[%s238 + $0x28] sm:$0xff]
        %v291 = vld [vmem:[%s238 + $0x30] sm:$0xff]
        %v292 = vld [vmem:[%s238 + $0x38] sm:$0xff]
        %v293 = vld [vmem:[%s238 + $0x40] sm:$0xff]
        %v294 = vld [vmem:[%s238 + $0x48] sm:$0xff]
        %v295 = vld [vmem:[%s238 + $0x50] sm:$0xff]
        %v296 = vld [vmem:[%s238 + $0x58] sm:$0xff]
        %v297 = vld [vmem:[#allocation7] sm:$0xff]
        %v298 = vld [vmem:[#allocation7 + $0x8] sm:$0xff]
        %v299 = vld [vmem:[#allocation7 + $0x10] sm:$0xff]
        %v300 = vld [vmem:[#allocation7 + $0x18] sm:$0xff]
        %v301 = vld [vmem:[#allocation7 + $0x20] sm:$0xff]
        %v302 = vld [vmem:[#allocation7 + $0x28] sm:$0xff]
        %v303 = vld [vmem:[#allocation7 + $0x30] sm:$0xff]
        %v304 = vld [vmem:[#allocation7 + $0x38] sm:$0xff]
        %v305 = vld [vmem:[#allocation7 + $0x40] sm:$0xff]
        %v306 = vld [vmem:[#allocation7 + $0x48] sm:$0xff]
        %v307 = vld [vmem:[#allocation7 + $0x50] sm:$0xff]
        %v308 = vld [vmem:[#allocation7 + $0x58] sm:$0xff]
        %v309 = vmul.f32 %v285, %v297
        %v310 = vmul.f32 %v286, %v298
        %v311 = vmul.f32 %v287, %v299
        %v312 = vmul.f32 %v288, %v300
        %v313 = vmul.f32 %v289, %v301
        %v314 = vmul.f32 %v290, %v302
        %v315 = vmul.f32 %v291, %v303
        %v316 = vmul.f32 %v292, %v304
        %v317 = vmul.f32 %v293, %v305
        %v318 = vmul.f32 %v294, %v306
        %v319 = vmul.f32 %v295, %v307
        %v320 = vmul.f32 %v296, %v308
        %v321 = vld [vmem:[#allocation8] sm:$0xff]
        %v322 = vld [vmem:[#allocation8 + $0x8] sm:$0xff]
        %v323 = vld [vmem:[#allocation8 + $0x10] sm:$0xff]
        %v324 = vld [vmem:[#allocation8 + $0x18] sm:$0xff]
        %v325 = vld [vmem:[#allocation8 + $0x20] sm:$0xff]
        %v326 = vld [vmem:[#allocation8 + $0x28] sm:$0xff]
        %v327 = vld [vmem:[#allocation8 + $0x30] sm:$0xff]
        %v328 = vld [vmem:[#allocation8 + $0x38] sm:$0xff]
        %v329 = vld [vmem:[#allocation8 + $0x40] sm:$0xff]
        %v330 = vld [vmem:[#allocation8 + $0x48] sm:$0xff]
        %v331 = vld [vmem:[#allocation8 + $0x50] sm:$0xff]
        %v332 = vld [vmem:[#allocation8 + $0x58] sm:$0xff]
        %v333 = vadd.f32 %v309, %v321
        %v334 = vadd.f32 %v310, %v322
        %v335 = vadd.f32 %v311, %v323
        %v336 = vadd.f32 %v312, %v324
        %v337 = vadd.f32 %v313, %v325
        %v338 = vadd.f32 %v314, %v326
        %v339 = vadd.f32 %v315, %v327
        %v340 = vadd.f32 %v316, %v328
        %v341 = vadd.f32 %v317, %v329
        %v342 = vadd.f32 %v318, %v330
        %v343 = vadd.f32 %v319, %v331
        %v344 = vadd.f32 %v320, %v332
        %v345 = vmax.f32 %v333, 0.0
        %v346 = vmax.f32 %v334, 0.0
        %v347 = vmax.f32 %v335, 0.0
        %v348 = vmax.f32 %v336, 0.0
        %v349 = vmax.f32 %v337, 0.0
        %v350 = vmax.f32 %v338, 0.0
        %v351 = vmax.f32 %v339, 0.0
        %v352 = vmax.f32 %v340, 0.0
        %v353 = vmax.f32 %v341, 0.0
        %v354 = vmax.f32 %v342, 0.0
        %v355 = vmax.f32 %v343, 0.0
        %v356 = vmax.f32 %v344, 0.0
        %v357 = vld [vmem:[%s247] sm:$0xff]
        %v358 = vld [vmem:[%s247 + $0x8] sm:$0xff]
        %v359 = vld [vmem:[%s247 + $0x10] sm:$0xff]
        %v360 = vld [vmem:[%s247 + $0x18] sm:$0xff]
        %v361 = vld [vmem:[#allocation7 + $0x60] sm:$0xff]
        %v362 = vld [vmem:[#allocation7 + $0x68] sm:$0xff]
        %v363 = vld [vmem:[#allocation7 + $0x70] sm:$0xff]
        %v364 = vld [vmem:[#allocation7 + $0x78] sm:$0xff]
        %v365 = vmul.f32 %v357, %v361
        %v366 = vmul.f32 %v358, %v362
        %v367 = vmul.f32 %v359, %v363
        %v368 = vmul.f32 %v360, %v364
        %v369 = vld [vmem:[#allocation8 + $0x60] sm:$0xff]
        %v370 = vld [vmem:[#allocation8 + $0x68] sm:$0xff]
        %v371 = vld [vmem:[#allocation8 + $0x70] sm:$0xff]
        %v372 = vld [vmem:[#allocation8 + $0x78] sm:$0xff]
        %v373 = vadd.f32 %v365, %v369
        %v374 = vadd.f32 %v366, %v370
        %v375 = vadd.f32 %v367, %v371
        %v376 = vadd.f32 %v368, %v372
        %v377 = vmax.f32 %v373, 0.0
        %v378 = vmax.f32 %v374, 0.0
        %v379 = vmax.f32 %v375, 0.0
        %v380 = vmax.f32 %v376, 0.0
        %381 = vst [vmem:[%s284] sm:$0xff] %v345
        %382 = vst [vmem:[%s284 + $0x8] sm:$0xff] %v346
        %383 = vst [vmem:[%s284 + $0x10] sm:$0xff] %v347
        %384 = vst [vmem:[%s284 + $0x18] sm:$0xff] %v348
        %385 = vst [vmem:[%s284 + $0x20] sm:$0xff] %v349
        %386 = vst [vmem:[%s284 + $0x28] sm:$0xff] %v350
        %387 = vst [vmem:[%s284 + $0x30] sm:$0xff] %v351
        %388 = vst [vmem:[%s284 + $0x38] sm:$0xff] %v352
        %389 = vst [vmem:[%s284 + $0x40] sm:$0xff] %v353
        %390 = vst [vmem:[%s284 + $0x48] sm:$0xff] %v354
        %391 = vst [vmem:[%s284 + $0x50] sm:$0xff] %v355
        %392 = vst [vmem:[%s284 + $0x58] sm:$0xff] %v356
        %393 = vst [vmem:[%s284 + $0x60] sm:$0xff] %v377
        %394 = vst [vmem:[%s284 + $0x68] sm:$0xff] %v378
        %395 = vst [vmem:[%s284 + $0x70] sm:$0xff] %v379
        %396 = vst [vmem:[%s284 + $0x78] sm:$0xff] %v380
        %s397 = sand.u32 %s127, 1
        %s398 = scalar_lea.sflag [#allocation4], %s397
        %s399 = sand.u32 %s127, 1
        %s400 = smul.addr %s399, 128
        %s401 = scalar_lea.vmem [#allocation10], %s400
        // Predicated region
        $region53: #{dpn_final_block_forward.1} parent=35 // pred_check
          %p402 = pneg %p137
        $region54: #{dpn_final_block_forward.1} parent=35 // pred_check_branch
          %404 = sbr.rel (%p402) target = $region56
        $region55: #{dpn_final_block_forward.1} parent=35 // pred_region
          %s406 = ssub.s32 2048, 2048
          %407 = vsyncadd %s398, %s406
          %s408 = smul.addr %s25, 16
          %s409 = smul.addr %s408, 128
          %s410 = scalar_lea.hbm %s4, %s409
          %s411 = sshll.u32 %s401, 4
          %s412 = int_to_ptr.vmem [resolvable:$true] %s411
          %417 = dma.vmem_to_hbm [thread:$0]  %s412, 2048, %s410, %s398, 128, 128, 8
        $region56: #{dpn_final_block_forward.1} parent=35 // pred_fallthru
          _
      $region36: #{dpn_final_block_forward.1} parent=5 // pred_fallthru
        _
      %p418 = scmp.le.s32.totalorder 2, %s20
      // Predicated region
      $region57: #{dpn_final_block_forward.1} parent=5 // pred_check
        %p419 = pneg %p418
      $region58: #{dpn_final_block_forward.1} parent=5 // pred_check_branch
        %421 = sbr.rel (%p419) target = $region60
      $region59: #{dpn_final_block_forward.1} parent=5 // pred_region
        %s422 = ssub.s32 %s20, 2
        // Predicated region
        $region61: #{dpn_final_block_forward.1} parent=59 // pred_check
          %p423 = pneg %p143
        $region62: #{dpn_final_block_forward.1} parent=59 // pred_check_branch
          %425 = sbr.rel (%p423) target = $region64
        $region63: #{dpn_final_block_forward.1} parent=59 // pred_region
          %s426 = sand.u32 %s128, 1
          %s427 = scalar_lea.sflag [#allocation4], %s426
          %s428 = sand.u32 %s128, 1
          %s429 = smul.addr %s428, 128
          %s430 = scalar_lea.vmem [#allocation10], %s429
          %431 = dma.done %s427, 2048
        $region64: #{dpn_final_block_forward.1} parent=59 // pred_fallthru
          _
      $region60: #{dpn_final_block_forward.1} parent=5 // pred_fallthru
        _
    $region6: #{dpn_final_block_forward.1} parent=1 // loop_footer
      %s24 = sadd.s32 1, %s20
    $region7: #{dpn_final_block_forward.1} parent=1 // loop_footer_branch
      %19 = sbr.rel target = $region3
    $region8: #{dpn_final_block_forward.1} parent=1 // loop_exit
      _
    %432 = vsyncpa [#allocation3], 1
    %s433 = scalar_lea.sflag [#allocation3], 1
    %434 = vsyncpa %s433, 1
    %435 = vsyncpa [#allocation6], 1
    %s436 = scalar_lea.sflag [#allocation6], 1
    %437 = vsyncpa %s436, 1
    %438 = vsyncpa [#allocation9], 1
    %439 = vsyncpa [#allocation4], 1
    %s440 = scalar_lea.sflag [#allocation4], 1
    %441 = vsyncpa %s440, 1

</llo_original>
